<compile_context>
chip_gen: v5e
topology: v5e:2x2
jax: 0.10.0
libtpu: 0.0.40
codegen_flags: <defaults>
</compile_context>

<pallas_src>
import jax
import jax.numpy as jnp
from jax import lax
from jax.experimental import pallas as pl
from jax.experimental.pallas import tpu as pltpu

BN_EPS = 1e-5
LN_EPS = 1e-5

# Row layout of the packed per-feature vectors.
# vec_in : (8, input_size)   -- x-halves of the folded BN scale/offset, per gate
_SU_X, _TU_X, _SR_X, _TR_X, _SC_X, _TC_X = range(6)
# vec_h  : (16, hidden_size) -- h-halves of BN, gate biases, LayerNorm params
(_SU_H, _TU_H, _SR_H, _TR_H, _SC_H, _TC_H,
 _BU, _BR, _BC, _LNG, _LNB) = range(11)


# ---------------------------------------------------------------------------
# Fused GRU-step kernel
# ---------------------------------------------------------------------------
def _gru_step_kernel(x_ref, h_ref, vin_ref, vh_ref,
                     wux_ref, wuh_ref, wrx_ref, wrh_ref, wcx_ref, wch_ref,
                     out_ref):
    """One fused MatMulFreeGRU step on a (TB, .) batch tile.

      u     = sigmoid( BN_u([x, h])   @ Wu + bu )
      r     = sigmoid( BN_r([x, h])   @ Wr + br )
      c     = tanh   ( BN_c([x, r*h]) @ Wc + bc )
      h_new = LayerNorm( (1 - u) * h + u * c )

    BN is pre-folded into per-feature (s, t); each W* is pre-ternarized,
    pre-transposed and split into an x-half (In, H) and an h-half (H, H), so
    there is no in-kernel concatenation.
    """
    x = x_ref[...]                                   # (TB, In)  f32
    h = h_ref[...]                                   # (TB, H)   f32
    vin = vin_ref[...]                               # (8, In)   f32
    vh = vh_ref[...]                                 # (16, H)   f32

    def row_in(i):
        return vin[i:i + 1]                          # (1, In)

    def row_h(i):
        return vh[i:i + 1]                           # (1, H)

    def dot(a, w_ref):
        return jnp.dot(a, w_ref[...], preferred_element_type=jnp.float32)

    # Folded eval-mode BatchNorm, per gate, per half (VPU; bf16 cast feeds MXU).
    xn_u = (x * row_in(_SU_X) + row_in(_TU_X)).astype(jnp.bfloat16)
    xn_r = (x * row_in(_SR_X) + row_in(_TR_X)).astype(jnp.bfloat16)
    xn_c = (x * row_in(_SC_X) + row_in(_TC_X)).astype(jnp.bfloat16)
    hn_u = (h * row_h(_SU_H) + row_h(_TU_H)).astype(jnp.bfloat16)
    hn_r = (h * row_h(_SR_H) + row_h(_TR_H)).astype(jnp.bfloat16)

    # Candidate x-half: independent of r, can be issued to the MXU early.
    cand_x = dot(xn_c, wcx_ref)

    # update / reset gates (x- and h-halves, no concatenation)
    u = jax.nn.sigmoid(dot(xn_u, wux_ref) + dot(hn_u, wuh_ref) + row_h(_BU))
    r = jax.nn.sigmoid(dot(xn_r, wrx_ref) + dot(hn_r, wrh_ref) + row_h(_BR))

    # candidate h-half (the only part that depends on r)
    hn_c = ((r * h) * row_h(_SC_H) + row_h(_TC_H)).astype(jnp.bfloat16)
    c = jnp.tanh(cand_x + dot(hn_c, wch_ref) + row_h(_BC))

    # GRU combine + LayerNorm epilogue (rsqrt -> EUP; everything stays in VMEM)
    h_new = (1.0 - u) * h + u * c
    mean = jnp.mean(h_new, axis=-1, keepdims=True)
    centered = h_new - mean
    var = jnp.mean(centered * centered, axis=-1, keepdims=True)
    out_ref[...] = (centered * lax.rsqrt(var + LN_EPS) * row_h(_LNG)
                    + row_h(_LNB))


# ---------------------------------------------------------------------------
# Wrapper
# ---------------------------------------------------------------------------
def _round_up(n, m):
    return ((n + m - 1) // m) * m


def matmul_free_gru(params, x, h=None, *, block_b=512):
    """Fused forward of MatMulFreeGRU (eval mode).  Returns (h_new, h_new)."""
    In = params["vec_in"].shape[-1]
    H = params["vec_h"].shape[-1]
    B = x.shape[0]
    assert x.shape == (B, In), (x.shape, In)

    # TODO(synk): sequence workloads should add an "arbitrary" time axis to the
    # grid and carry h in a VMEM scratch accumulator instead of round-tripping
    # it through HBM each step; the module's forward is a single step.
    x = x.astype(jnp.float32)
    if h is None:
        h = jnp.zeros((B, H), jnp.float32)
    else:
        h = h.astype(jnp.float32)

    # Batch tile: big lane-dense tiles for large batches; at least two grid
    # steps when B >= 16 so the "parallel" axis can occupy both v7x TensorCores.
    if B > block_b:
        tb = block_b
    elif B >= 16:
        tb = _round_up((B + 1) // 2, 8)
    else:
        tb = _round_up(max(B, 1), 8)
    Bp = _round_up(B, tb)
    if Bp != B:
        x = jnp.pad(x, ((0, Bp - B), (0, 0)))
        h = jnp.pad(h, ((0, Bp - B), (0, 0)))

    const_args = [params["vec_in"], params["vec_h"],
                  params["wux"], params["wuh"],
                  params["wrx"], params["wrh"],
                  params["wcx"], params["wch"]]
    args = [x, h] + const_args

    def batch_spec(f):
        return pl.BlockSpec((tb, f), lambda i: (i, 0))

    def full_spec(a):
        # full-array block, constant index -> fetched once, resident across grid
        return pl.BlockSpec(a.shape, lambda i: (0, 0))

    in_specs = [batch_spec(In), batch_spec(H)] + [full_spec(a) for a in const_args]

    # Explicit VMEM budget: double-buffered batch tiles + resident constants +
    # headroom for intermediates / compiler scratch.  Clamped to stay inside
    # v7x's 64 MiB physical VMEM and above v5e's 16 MiB scoped default.
    const_bytes = sum(int(a.size) * a.dtype.itemsize for a in const_args)
    tile_bytes = tb * (In + 2 * H) * 4
    vmem_limit = int(min(max(2 * const_bytes + 8 * tile_bytes + (4 << 20),
                             16 << 20), 64 << 20))

    h_new = pl.pallas_call(
        _gru_step_kernel,
        out_shape=jax.ShapeDtypeStruct((Bp, H), jnp.float32),
        grid=(Bp // tb,),
        in_specs=in_specs,
        out_specs=batch_spec(H),
        compiler_params=pltpu.CompilerParams(
            dimension_semantics=("parallel",),
            vmem_limit_bytes=vmem_limit),
    )(*args)

    h_new = h_new[:B]
    return h_new, h_new


# ---------------------------------------------------------------------------
# Parameter initialization (deterministic; all param-side prep done ONCE here)
# ---------------------------------------------------------------------------
def _ternarize(weight, alpha):
    """Exact PyTorch nested where: where(w-a > 0, 1, where(w-a < 1, -1, 0))."""
    d = weight - alpha[None, :]
    return jnp.where(d > 0.0, 1.0, jnp.where(d < 1.0, -1.0, 0.0))


def _init_ternary_gate(key, input_size, hidden_size):
    """TernaryLinear(in=input+hidden, out=hidden) params, pre-split/pre-folded."""
    in_f = input_size + hidden_size
    out_f = hidden_size
    k = jax.random.split(key, 6)
    bound = 1.0 / (in_f ** 0.5)              # kaiming_uniform(a=sqrt(5)) / bias bound
    weight = jax.random.uniform(k[0], (out_f, in_f), jnp.float32, -bound, bound)
    alpha = jnp.sum(weight, axis=0)          # sum(self.weight) / (n*m), n=m=1
    bias = jax.random.uniform(k[1], (out_f,), jnp.float32, -bound, bound)

    w_t = _ternarize(weight, alpha)          # (out, in), values in {-1, +1}
    wx = w_t[:, :input_size].T.astype(jnp.bfloat16)   # (In, H), exact in bf16
    wh = w_t[:, input_size:].T.astype(jnp.bfloat16)   # (H, H),  exact in bf16

    # input_norm = BatchNorm1d(in_f), eval-mode running stats, folded to x*s + t
    gamma = jax.random.uniform(k[2], (in_f,), jnp.float32, 0.5, 1.5)
    beta = jax.random.uniform(k[3], (in_f,), jnp.float32, -0.1, 0.1)
    mean = jax.random.uniform(k[4], (in_f,), jnp.float32, -0.5, 0.5)
    var = jax.random.uniform(k[5], (in_f,), jnp.float32, 0.5, 1.5)
    s = gamma * lax.rsqrt(var + BN_EPS)
    t = beta - mean * s

    return {
        "wx": wx, "wh": wh, "b": bias,
        "sx": s[:input_size], "tx": t[:input_size],
        "sh": s[input_size:], "th": t[input_size:],
    }


def init_matmul_free_gru(key, input_size, hidden_size):
    ku, kr, kc = jax.random.split(key, 3)
    gu = _init_ternary_gate(ku, input_size, hidden_size)
    gr = _init_ternary_gate(kr, input_size, hidden_size)
    gc = _init_ternary_gate(kc, input_size, hidden_size)
    ln_gamma = jnp.ones((hidden_size,), jnp.float32)
    ln_beta = jnp.zeros((hidden_size,), jnp.float32)

    # Pack the small per-feature vectors into two stacked arrays; the row
    # layout matches the _S*/_T*/_B*/_LN* constants (padded to 8/16 sublanes).
    vec_in = jnp.concatenate([
        jnp.stack([gu["sx"], gu["tx"], gr["sx"], gr["tx"], gc["sx"], gc["tx"]]),
        jnp.zeros((2, input_size), jnp.float32)], axis=0)
    vec_h = jnp.concatenate([
        jnp.stack([gu["sh"], gu["th"], gr["sh"], gr["th"], gc["sh"], gc["th"],
                   gu["b"], gr["b"], gc["b"], ln_gamma, ln_beta]),
        jnp.zeros((5, hidden_size), jnp.float32)], axis=0)

    return {
        "vec_in": vec_in.astype(jnp.float32),   # (8, In)
        "vec_h": vec_h.astype(jnp.float32),     # (16, H)
        "wux": gu["wx"], "wuh": gu["wh"],
        "wrx": gr["wx"], "wrh": gr["wh"],
        "wcx": gc["wx"], "wch": gc["wh"],
    }

# TODO(synk): Dropout / train-mode BatchNorm batch statistics are stochastic /
# batch-dependent; the kernel implements deterministic eval-mode semantics.


if __name__ == "__main__":
    INPUT_SIZE = 128
    HIDDEN_SIZE = 128
    BATCH = 8

    key = jax.random.PRNGKey(0)
    k_params, k_x = jax.random.split(key)
    params = init_matmul_free_gru(k_params, INPUT_SIZE, HIDDEN_SIZE)
    x = jax.random.normal(k_x, (BATCH, INPUT_SIZE), jnp.float32)

    fwd = jax.jit(matmul_free_gru)
    h_new, h_out = fwd(params, x)                 # h=None -> zeros, like the module
    jax.block_until_ready((h_new, h_out))

    assert h_new.shape == (BATCH, HIDDEN_SIZE), h_new.shape
    assert h_out.shape == (BATCH, HIDDEN_SIZE), h_out.shape
    assert bool(jnp.all(jnp.isfinite(h_new)))
    print("KERNEL_OK")
</pallas_src>

<mosaic_0001>
module attributes {stable_mosaic.version = 11 : i64} {
  func.func @_gru_step_kernel(%arg0: i32, %arg1: memref<8x128xf32, #tpu.memory_space<vmem>>, %arg2: memref<8x128xf32, #tpu.memory_space<vmem>>, %arg3: memref<8x128xf32, #tpu.memory_space<vmem>>, %arg4: memref<16x128xf32, #tpu.memory_space<vmem>>, %arg5: memref<128x128xbf16, #tpu.memory_space<vmem>>, %arg6: memref<128x128xbf16, #tpu.memory_space<vmem>>, %arg7: memref<128x128xbf16, #tpu.memory_space<vmem>>, %arg8: memref<128x128xbf16, #tpu.memory_space<vmem>>, %arg9: memref<128x128xbf16, #tpu.memory_space<vmem>>, %arg10: memref<128x128xbf16, #tpu.memory_space<vmem>>, %arg11: memref<8x128xf32, #tpu.memory_space<vmem>>) attributes {dimension_semantics = [#tpu.dimension_semantics<parallel>], iteration_bounds = array<i64: 1>, scalar_prefetch = 0 : i64, scratch_operands = 0 : i64, tpu.core_type = #tpu.core_type<tc>, window_params = [{transform_indices = @transform_0, window_bounds = array<i64: 8, 128>}, {transform_indices = @transform_1, window_bounds = array<i64: 8, 128>}, {pipeline_mode = #tpu.pipeline_mode<synchronous>, transform_indices = @transform_2, window_bounds = array<i64: 8, 128>}, {pipeline_mode = #tpu.pipeline_mode<synchronous>, transform_indices = @transform_3, window_bounds = array<i64: 16, 128>}, {pipeline_mode = #tpu.pipeline_mode<synchronous>, transform_indices = @transform_4, window_bounds = array<i64: 128, 128>}, {pipeline_mode = #tpu.pipeline_mode<synchronous>, transform_indices = @transform_5, window_bounds = array<i64: 128, 128>}, {pipeline_mode = #tpu.pipeline_mode<synchronous>, transform_indices = @transform_6, window_bounds = array<i64: 128, 128>}, {pipeline_mode = #tpu.pipeline_mode<synchronous>, transform_indices = @transform_7, window_bounds = array<i64: 128, 128>}, {pipeline_mode = #tpu.pipeline_mode<synchronous>, transform_indices = @transform_8, window_bounds = array<i64: 128, 128>}, {pipeline_mode = #tpu.pipeline_mode<synchronous>, transform_indices = @transform_9, window_bounds = array<i64: 128, 128>}, {transform_indices = @transform_10, window_bounds = array<i64: 8, 128>}]} {
    %c0 = arith.constant 0 : index
    %c0_0 = arith.constant 0 : index
    %0 = vector.load %arg1[%c0, %c0_0] : memref<8x128xf32, #tpu.memory_space<vmem>>, vector<8x128xf32>
    %c0_1 = arith.constant 0 : index
    %c0_2 = arith.constant 0 : index
    %1 = vector.load %arg2[%c0_1, %c0_2] : memref<8x128xf32, #tpu.memory_space<vmem>>, vector<8x128xf32>
    %c0_3 = arith.constant 0 : index
    %c0_4 = arith.constant 0 : index
    %2 = vector.load %arg3[%c0_3, %c0_4] : memref<8x128xf32, #tpu.memory_space<vmem>>, vector<8x128xf32>
    %c0_5 = arith.constant 0 : index
    %c0_6 = arith.constant 0 : index
    %3 = vector.load %arg4[%c0_5, %c0_6] : memref<16x128xf32, #tpu.memory_space<vmem>>, vector<16x128xf32>
    %4 = vector.extract_strided_slice %2 {offsets = [0, 0], sizes = [1, 128], strides = [1, 1]} : vector<8x128xf32> to vector<1x128xf32>
    %5 = vector.broadcast %4 : vector<1x128xf32> to vector<8x128xf32>
    %6 = arith.mulf %0, %5 : vector<8x128xf32>
    %7 = vector.extract_strided_slice %2 {offsets = [1, 0], sizes = [1, 128], strides = [1, 1]} : vector<8x128xf32> to vector<1x128xf32>
    %8 = vector.broadcast %7 : vector<1x128xf32> to vector<8x128xf32>
    %9 = arith.addf %6, %8 : vector<8x128xf32>
    %10 = arith.truncf %9 : vector<8x128xf32> to vector<8x128xbf16>
    %11 = vector.extract_strided_slice %2 {offsets = [2, 0], sizes = [1, 128], strides = [1, 1]} : vector<8x128xf32> to vector<1x128xf32>
    %12 = vector.broadcast %11 : vector<1x128xf32> to vector<8x128xf32>
    %13 = arith.mulf %0, %12 : vector<8x128xf32>
    %14 = vector.extract_strided_slice %2 {offsets = [3, 0], sizes = [1, 128], strides = [1, 1]} : vector<8x128xf32> to vector<1x128xf32>
    %15 = vector.broadcast %14 : vector<1x128xf32> to vector<8x128xf32>
    %16 = arith.addf %13, %15 : vector<8x128xf32>
    %17 = arith.truncf %16 : vector<8x128xf32> to vector<8x128xbf16>
    %18 = vector.extract_strided_slice %2 {offsets = [4, 0], sizes = [1, 128], strides = [1, 1]} : vector<8x128xf32> to vector<1x128xf32>
    %19 = vector.broadcast %18 : vector<1x128xf32> to vector<8x128xf32>
    %20 = arith.mulf %0, %19 : vector<8x128xf32>
    %21 = vector.extract_strided_slice %2 {offsets = [5, 0], sizes = [1, 128], strides = [1, 1]} : vector<8x128xf32> to vector<1x128xf32>
    %22 = vector.broadcast %21 : vector<1x128xf32> to vector<8x128xf32>
    %23 = arith.addf %20, %22 : vector<8x128xf32>
    %24 = arith.truncf %23 : vector<8x128xf32> to vector<8x128xbf16>
    %25 = vector.extract_strided_slice %3 {offsets = [0, 0], sizes = [1, 128], strides = [1, 1]} : vector<16x128xf32> to vector<1x128xf32>
    %26 = vector.broadcast %25 : vector<1x128xf32> to vector<8x128xf32>
    %27 = arith.mulf %1, %26 : vector<8x128xf32>
    %28 = vector.extract_strided_slice %3 {offsets = [1, 0], sizes = [1, 128], strides = [1, 1]} : vector<16x128xf32> to vector<1x128xf32>
    %29 = vector.broadcast %28 : vector<1x128xf32> to vector<8x128xf32>
    %30 = arith.addf %27, %29 : vector<8x128xf32>
    %31 = arith.truncf %30 : vector<8x128xf32> to vector<8x128xbf16>
    %32 = vector.extract_strided_slice %3 {offsets = [2, 0], sizes = [1, 128], strides = [1, 1]} : vector<16x128xf32> to vector<1x128xf32>
    %33 = vector.broadcast %32 : vector<1x128xf32> to vector<8x128xf32>
    %34 = arith.mulf %1, %33 : vector<8x128xf32>
    %35 = vector.extract_strided_slice %3 {offsets = [3, 0], sizes = [1, 128], strides = [1, 1]} : vector<16x128xf32> to vector<1x128xf32>
    %36 = vector.broadcast %35 : vector<1x128xf32> to vector<8x128xf32>
    %37 = arith.addf %34, %36 : vector<8x128xf32>
    %38 = arith.truncf %37 : vector<8x128xf32> to vector<8x128xbf16>
    %c0_7 = arith.constant 0 : index
    %c0_8 = arith.constant 0 : index
    %39 = vector.load %arg9[%c0_7, %c0_8] : memref<128x128xbf16, #tpu.memory_space<vmem>>, vector<128x128xbf16>
    %cst = arith.constant dense<0.000000e+00> : vector<8x128xf32>
    %40 = tpu.matmul %24, %39, %cst {dimension_numbers = #tpu.dot_dimension_numbers<[1], [0], [0], [1], [0, 0, 1, 1], [], []>} : vector<8x128xbf16>, vector<128x128xbf16>, vector<8x128xf32> -> vector<8x128xf32>
    %c0_9 = arith.constant 0 : index
    %c0_10 = arith.constant 0 : index
    %41 = vector.load %arg5[%c0_9, %c0_10] : memref<128x128xbf16, #tpu.memory_space<vmem>>, vector<128x128xbf16>
    %cst_11 = arith.constant dense<0.000000e+00> : vector<8x128xf32>
    %42 = tpu.matmul %10, %41, %cst_11 {dimension_numbers = #tpu.dot_dimension_numbers<[1], [0], [0], [1], [0, 0, 1, 1], [], []>} : vector<8x128xbf16>, vector<128x128xbf16>, vector<8x128xf32> -> vector<8x128xf32>
    %c0_12 = arith.constant 0 : index
    %c0_13 = arith.constant 0 : index
    %43 = vector.load %arg6[%c0_12, %c0_13] : memref<128x128xbf16, #tpu.memory_space<vmem>>, vector<128x128xbf16>
    %cst_14 = arith.constant dense<0.000000e+00> : vector<8x128xf32>
    %44 = tpu.matmul %31, %43, %cst_14 {dimension_numbers = #tpu.dot_dimension_numbers<[1], [0], [0], [1], [0, 0, 1, 1], [], []>} : vector<8x128xbf16>, vector<128x128xbf16>, vector<8x128xf32> -> vector<8x128xf32>
    %45 = arith.addf %42, %44 : vector<8x128xf32>
    %46 = vector.extract_strided_slice %3 {offsets = [6, 0], sizes = [1, 128], strides = [1, 1]} : vector<16x128xf32> to vector<1x128xf32>
    %47 = vector.broadcast %46 : vector<1x128xf32> to vector<8x128xf32>
    %48 = arith.addf %45, %47 : vector<8x128xf32>
    %49 = arith.negf %48 : vector<8x128xf32>
    %50 = math.exp %49 : vector<8x128xf32>
    %cst_15 = arith.constant 1.000000e+00 : f32
    %51 = vector.broadcast %cst_15 : f32 to vector<8x128xf32>
    %52 = arith.addf %51, %50 : vector<8x128xf32>
    %53 = arith.divf %51, %52 : vector<8x128xf32>
    %c0_16 = arith.constant 0 : index
    %c0_17 = arith.constant 0 : index
    %54 = vector.load %arg7[%c0_16, %c0_17] : memref<128x128xbf16, #tpu.memory_space<vmem>>, vector<128x128xbf16>
    %cst_18 = arith.constant dense<0.000000e+00> : vector<8x128xf32>
    %55 = tpu.matmul %17, %54, %cst_18 {dimension_numbers = #tpu.dot_dimension_numbers<[1], [0], [0], [1], [0, 0, 1, 1], [], []>} : vector<8x128xbf16>, vector<128x128xbf16>, vector<8x128xf32> -> vector<8x128xf32>
    %c0_19 = arith.constant 0 : index
    %c0_20 = arith.constant 0 : index
    %56 = vector.load %arg8[%c0_19, %c0_20] : memref<128x128xbf16, #tpu.memory_space<vmem>>, vector<128x128xbf16>
    %cst_21 = arith.constant dense<0.000000e+00> : vector<8x128xf32>
    %57 = tpu.matmul %38, %56, %cst_21 {dimension_numbers = #tpu.dot_dimension_numbers<[1], [0], [0], [1], [0, 0, 1, 1], [], []>} : vector<8x128xbf16>, vector<128x128xbf16>, vector<8x128xf32> -> vector<8x128xf32>
    %58 = arith.addf %55, %57 : vector<8x128xf32>
    %59 = vector.extract_strided_slice %3 {offsets = [7, 0], sizes = [1, 128], strides = [1, 1]} : vector<16x128xf32> to vector<1x128xf32>
    %60 = vector.broadcast %59 : vector<1x128xf32> to vector<8x128xf32>
    %61 = arith.addf %58, %60 : vector<8x128xf32>
    %62 = arith.negf %61 : vector<8x128xf32>
    %63 = math.exp %62 : vector<8x128xf32>
    %cst_22 = arith.constant 1.000000e+00 : f32
    %64 = vector.broadcast %cst_22 : f32 to vector<8x128xf32>
    %65 = arith.addf %64, %63 : vector<8x128xf32>
    %66 = arith.divf %64, %65 : vector<8x128xf32>
    %67 = arith.mulf %66, %1 : vector<8x128xf32>
    %68 = vector.extract_strided_slice %3 {offsets = [4, 0], sizes = [1, 128], strides = [1, 1]} : vector<16x128xf32> to vector<1x128xf32>
    %69 = vector.broadcast %68 : vector<1x128xf32> to vector<8x128xf32>
    %70 = arith.mulf %67, %69 : vector<8x128xf32>
    %71 = vector.extract_strided_slice %3 {offsets = [5, 0], sizes = [1, 128], strides = [1, 1]} : vector<16x128xf32> to vector<1x128xf32>
    %72 = vector.broadcast %71 : vector<1x128xf32> to vector<8x128xf32>
    %73 = arith.addf %70, %72 : vector<8x128xf32>
    %74 = arith.truncf %73 : vector<8x128xf32> to vector<8x128xbf16>
    %c0_23 = arith.constant 0 : index
    %c0_24 = arith.constant 0 : index
    %75 = vector.load %arg10[%c0_23, %c0_24] : memref<128x128xbf16, #tpu.memory_space<vmem>>, vector<128x128xbf16>
    %cst_25 = arith.constant dense<0.000000e+00> : vector<8x128xf32>
    %76 = tpu.matmul %74, %75, %cst_25 {dimension_numbers = #tpu.dot_dimension_numbers<[1], [0], [0], [1], [0, 0, 1, 1], [], []>} : vector<8x128xbf16>, vector<128x128xbf16>, vector<8x128xf32> -> vector<8x128xf32>
    %77 = arith.addf %40, %76 : vector<8x128xf32>
    %78 = vector.extract_strided_slice %3 {offsets = [8, 0], sizes = [1, 128], strides = [1, 1]} : vector<16x128xf32> to vector<1x128xf32>
    %79 = vector.broadcast %78 : vector<1x128xf32> to vector<8x128xf32>
    %80 = arith.addf %77, %79 : vector<8x128xf32>
    %81 = math.tanh %80 : vector<8x128xf32>
    %cst_26 = arith.constant 1.000000e+00 : f32
    %82 = vector.broadcast %cst_26 : f32 to vector<8x128xf32>
    %83 = arith.subf %82, %53 : vector<8x128xf32>
    %84 = arith.mulf %83, %1 : vector<8x128xf32>
    %85 = arith.mulf %53, %81 : vector<8x128xf32>
    %86 = arith.addf %84, %85 : vector<8x128xf32>
    %cst_27 = arith.constant dense<0.000000e+00> : vector<8xf32>
    %87 = vector.multi_reduction <add>, %86, %cst_27 [1] : vector<8x128xf32> to vector<8xf32>
    %88 = vector.shape_cast %87 : vector<8xf32> to vector<8x1xf32>
    %cst_28 = arith.constant 1.280000e+02 : f32
    %89 = vector.broadcast %cst_28 : f32 to vector<8x1xf32>
    %90 = arith.divf %88, %89 : vector<8x1xf32>
    %91 = vector.broadcast %90 : vector<8x1xf32> to vector<8x128xf32>
    %92 = arith.subf %86, %91 : vector<8x128xf32>
    %93 = arith.mulf %92, %92 : vector<8x128xf32>
    %cst_29 = arith.constant dense<0.000000e+00> : vector<8xf32>
    %94 = vector.multi_reduction <add>, %93, %cst_29 [1] : vector<8x128xf32> to vector<8xf32>
    %95 = vector.shape_cast %94 : vector<8xf32> to vector<8x1xf32>
    %cst_30 = arith.constant 1.280000e+02 : f32
    %96 = vector.broadcast %cst_30 : f32 to vector<8x1xf32>
    %97 = arith.divf %95, %96 : vector<8x1xf32>
    %cst_31 = arith.constant 9.99999974E-6 : f32
    %98 = vector.broadcast %cst_31 : f32 to vector<8x1xf32>
    %99 = arith.addf %97, %98 : vector<8x1xf32>
    %100 = math.rsqrt %99 : vector<8x1xf32>
    %101 = vector.broadcast %100 : vector<8x1xf32> to vector<8x128xf32>
    %102 = arith.mulf %92, %101 : vector<8x128xf32>
    %103 = vector.extract_strided_slice %3 {offsets = [9, 0], sizes = [1, 128], strides = [1, 1]} : vector<16x128xf32> to vector<1x128xf32>
    %104 = vector.broadcast %103 : vector<1x128xf32> to vector<8x128xf32>
    %105 = arith.mulf %102, %104 : vector<8x128xf32>
    %106 = vector.extract_strided_slice %3 {offsets = [10, 0], sizes = [1, 128], strides = [1, 1]} : vector<16x128xf32> to vector<1x128xf32>
    %107 = vector.broadcast %106 : vector<1x128xf32> to vector<8x128xf32>
    %108 = arith.addf %105, %107 : vector<8x128xf32>
    %c0_32 = arith.constant 0 : index
    %c0_33 = arith.constant 0 : index
    %109 = vector.load %arg11[%c0_32, %c0_33] : memref<8x128xf32, #tpu.memory_space<vmem>>, vector<8x128xf32>
    tpu.vector_store %arg11[%c0_32, %c0_33], %108 {strides = array<i32>} : memref<8x128xf32, #tpu.memory_space<vmem>>, vector<8x128xf32>,
    return
  }
  func.func @transform_0(%arg0: i32) -> (i32, i32) {
    %c0_i32 = arith.constant 0 : i32
    %c0_i32_0 = arith.constant 0 : i32
    return %arg0, %c0_i32 : i32, i32
  }
  func.func @transform_1(%arg0: i32) -> (i32, i32) {
    %c0_i32 = arith.constant 0 : i32
    %c0_i32_0 = arith.constant 0 : i32
    return %arg0, %c0_i32 : i32, i32
  }
  func.func @transform_2(%arg0: i32) -> (i32, i32) {
    %c0_i32 = arith.constant 0 : i32
    %c0_i32_0 = arith.constant 0 : i32
    %c0_i32_1 = arith.constant 0 : i32
    return %c0_i32, %c0_i32_0 : i32, i32
  }
  func.func @transform_3(%arg0: i32) -> (i32, i32) {
    %c0_i32 = arith.constant 0 : i32
    %c0_i32_0 = arith.constant 0 : i32
    %c0_i32_1 = arith.constant 0 : i32
    return %c0_i32, %c0_i32_0 : i32, i32
  }
  func.func @transform_4(%arg0: i32) -> (i32, i32) {
    %c0_i32 = arith.constant 0 : i32
    %c0_i32_0 = arith.constant 0 : i32
    %c0_i32_1 = arith.constant 0 : i32
    return %c0_i32, %c0_i32_0 : i32, i32
  }
  func.func @transform_5(%arg0: i32) -> (i32, i32) {
    %c0_i32 = arith.constant 0 : i32
    %c0_i32_0 = arith.constant 0 : i32
    %c0_i32_1 = arith.constant 0 : i32
    return %c0_i32, %c0_i32_0 : i32, i32
  }
  func.func @transform_6(%arg0: i32) -> (i32, i32) {
    %c0_i32 = arith.constant 0 : i32
    %c0_i32_0 = arith.constant 0 : i32
    %c0_i32_1 = arith.constant 0 : i32
    return %c0_i32, %c0_i32_0 : i32, i32
  }
  func.func @transform_7(%arg0: i32) -> (i32, i32) {
    %c0_i32 = arith.constant 0 : i32
    %c0_i32_0 = arith.constant 0 : i32
    %c0_i32_1 = arith.constant 0 : i32
    return %c0_i32, %c0_i32_0 : i32, i32
  }
  func.func @transform_8(%arg0: i32) -> (i32, i32) {
    %c0_i32 = arith.constant 0 : i32
    %c0_i32_0 = arith.constant 0 : i32
    %c0_i32_1 = arith.constant 0 : i32
    return %c0_i32, %c0_i32_0 : i32, i32
  }
  func.func @transform_9(%arg0: i32) -> (i32, i32) {
    %c0_i32 = arith.constant 0 : i32
    %c0_i32_0 = arith.constant 0 : i32
    %c0_i32_1 = arith.constant 0 : i32
    return %c0_i32, %c0_i32_0 : i32, i32
  }
  func.func @transform_10(%arg0: i32) -> (i32, i32) {
    %c0_i32 = arith.constant 0 : i32
    %c0_i32_0 = arith.constant 0 : i32
    return %arg0, %c0_i32 : i32, i32
  }
}

</mosaic_0001>

<llo_original>
// kernel: matmul_free_gru.1
$region0: #{matmul_free_gru.1}
  #allocation0 [shape = 'u32[]', space=smem, size = 0x4, offset = 0x4, fixed_abs, tag = 'smem constant byte address 0x4 - core index']
  #allocation1 [shape = 'u32[72,128]{1,0:T(1,128)}', space=vmem, size = 0x9000, scoped, tag = 'internal scratch']
  %s0 = inlined_call_operand.vmem [shape: f32[8,128], index: 0, kind: input, shape index: {}]
  %s1 = inlined_call_operand.vmem [shape: f32[8,128], index: 1, kind: input, shape index: {}]
  %s2 = inlined_call_operand.hbm [shape: f32[8,128], index: 2, kind: input, shape index: {}]
  %s3 = inlined_call_operand.hbm [shape: f32[16,128], index: 3, kind: input, shape index: {}]
  %s4 = inlined_call_operand.hbm [shape: bf16[128,128], index: 4, kind: input, shape index: {}]
  %s5 = inlined_call_operand.hbm [shape: bf16[128,128], index: 5, kind: input, shape index: {}]
  %s6 = inlined_call_operand.hbm [shape: bf16[128,128], index: 6, kind: input, shape index: {}]
  %s7 = inlined_call_operand.hbm [shape: bf16[128,128], index: 7, kind: input, shape index: {}]
  %s8 = inlined_call_operand.hbm [shape: bf16[128,128], index: 8, kind: input, shape index: {}]
  %s9 = inlined_call_operand.hbm [shape: bf16[128,128], index: 9, kind: input, shape index: {}]
  %s10 = inlined_call_operand.vmem [shape: f32[8,128], index: 10, kind: output, shape index: {}]
  %s11 = sld [smem:[#allocation0]]
  $region82: #{matmul_free_gru.1} parent=0
    _
  %s13 = ssub.s32 1, %s11
  %s14 = scalar_select 0, %s13, %s11
  $region1: #{matmul_free_gru.1} parent=0
    #allocation2 [shape = 'u8[4096]{0}', space=vmem, size = 0x1000, scoped, tag = 'input window, operand 2, single buffered']
    #allocation3 [shape = 's32[1]{0}', space=sflag, size = 0x4, scoped, tag = 'scoped memory for matmul_free_gru.1']
    #allocation4 [shape = 'u8[8192]{0}', space=vmem, size = 0x2000, scoped, tag = 'input window, operand 3, single buffered']
    #allocation5 [shape = 's32[1]{0}', space=sflag, size = 0x4, scoped, tag = 'scoped memory for matmul_free_gru.1']
    #allocation6 [shape = 'u8[32768]{0}', space=vmem, size = 0x8000, scoped, tag = 'input window, operand 4, single buffered']
    #allocation7 [shape = 'u8[32768]{0}', space=vmem, size = 0x8000, scoped, tag = 'input window, operand 5, single buffered']
    #allocation8 [shape = 's32[1]{0}', space=sflag, size = 0x4, scoped, tag = 'scoped memory for matmul_free_gru.1']
    #allocation9 [shape = 'u8[32768]{0}', space=vmem, size = 0x8000, scoped, tag = 'input window, operand 6, single buffered']
    #allocation10 [shape = 'u8[32768]{0}', space=vmem, size = 0x8000, scoped, tag = 'input window, operand 7, single buffered']
    #allocation11 [shape = 's32[1]{0}', space=sflag, size = 0x4, scoped, tag = 'scoped memory for matmul_free_gru.1']
    #allocation12 [shape = 'u8[32768]{0}', space=vmem, size = 0x8000, scoped, tag = 'input window, operand 8, single buffered']
    #allocation13 [shape = 'u8[32768]{0}', space=vmem, size = 0x8000, scoped, tag = 'input window, operand 9, single buffered']
    #allocation14 [shape = 's32[1]{0}', space=sflag, size = 0x4, scoped, tag = 'scoped memory for matmul_free_gru.1']
    %15 = vsyncpa [#allocation3], 0
    %16 = vsyncpa [#allocation5], 0
    %17 = vsyncpa [#allocation8], 0
    %18 = vsyncpa [#allocation11], 0
    %19 = vsyncpa [#allocation14], 0
    // Predicated region
    $region2: #{matmul_free_gru.1} parent=1 // pred_check
      _
    $region3: #{matmul_free_gru.1} parent=1 // pred_check_branch
      %21 = sbr.rel (0) target = $region5
    $region4: #{matmul_free_gru.1} parent=1 // pred_region
      _
    $region5: #{matmul_free_gru.1} parent=1 // pred_fallthru
      _
    // Predicated region
    $region6: #{matmul_free_gru.1} parent=1 // pred_check
      _
    $region7: #{matmul_free_gru.1} parent=1 // pred_check_branch
      %23 = sbr.rel (0) target = $region9
    $region8: #{matmul_free_gru.1} parent=1 // pred_region
      _
    $region9: #{matmul_free_gru.1} parent=1 // pred_fallthru
      _
    // Predicated region
    $region10: #{matmul_free_gru.1} parent=1 // pred_check
      _
    $region11: #{matmul_free_gru.1} parent=1 // pred_check_branch
      %25 = sbr.rel (0) target = $region13
    $region12: #{matmul_free_gru.1} parent=1 // pred_region
      %27 = vsyncadd [#allocation3], 0
      %s29 = sshll.u32 %s2, 4
      %s30 = int_to_ptr.hbm [resolvable:$true] %s29
      %s31 = sshll.u32 [#allocation2], 4
      %s32 = int_to_ptr.vmem [resolvable:$true] %s31
      %34 = dma.hbm_to_vmem [thread:$0]  %s30, 128, %s32, [#allocation3]
    $region13: #{matmul_free_gru.1} parent=1 // pred_fallthru
      _
    // Predicated region
    $region14: #{matmul_free_gru.1} parent=1 // pred_check
      _
    $region15: #{matmul_free_gru.1} parent=1 // pred_check_branch
      %36 = sbr.rel (0) target = $region17
    $region16: #{matmul_free_gru.1} parent=1 // pred_region
      %38 = vsyncadd [#allocation5], 0
      %s39 = sshll.u32 %s3, 4
      %s40 = int_to_ptr.hbm [resolvable:$true] %s39
      %s41 = sshll.u32 [#allocation4], 4
      %s42 = int_to_ptr.vmem [resolvable:$true] %s41
      %47 = dma.hbm_to_vmem [thread:$0]  %s40, 256, %s42, [#allocation5], 128, 128, 8
    $region17: #{matmul_free_gru.1} parent=1 // pred_fallthru
      _
    // Predicated region
    $region18: #{matmul_free_gru.1} parent=1 // pred_check
      _
    $region19: #{matmul_free_gru.1} parent=1 // pred_check_branch
      %49 = sbr.rel (0) target = $region21
    $region20: #{matmul_free_gru.1} parent=1 // pred_region
      %51 = vsyncadd [#allocation5], 0
      %s52 = sshll.u32 %s4, 4
      %s53 = int_to_ptr.hbm [resolvable:$true] %s52
      %s54 = sshll.u32 [#allocation6], 4
      %s55 = int_to_ptr.vmem [resolvable:$true] %s54
      %60 = dma.hbm_to_vmem [thread:$0]  %s53, 1024, %s55, [#allocation5], 64, 64, 4
    $region21: #{matmul_free_gru.1} parent=1 // pred_fallthru
      _
    // Predicated region
    $region22: #{matmul_free_gru.1} parent=1 // pred_check
      _
    $region23: #{matmul_free_gru.1} parent=1 // pred_check_branch
      %62 = sbr.rel (0) target = $region25
    $region24: #{matmul_free_gru.1} parent=1 // pred_region
      %64 = vsyncadd [#allocation8], 0
      %s65 = sshll.u32 %s5, 4
      %s66 = int_to_ptr.hbm [resolvable:$true] %s65
      %s67 = sshll.u32 [#allocation7], 4
      %s68 = int_to_ptr.vmem [resolvable:$true] %s67
      %73 = dma.hbm_to_vmem [thread:$0]  %s66, 1024, %s68, [#allocation8], 64, 64, 4
    $region25: #{matmul_free_gru.1} parent=1 // pred_fallthru
      _
    // Predicated region
    $region26: #{matmul_free_gru.1} parent=1 // pred_check
      _
    $region27: #{matmul_free_gru.1} parent=1 // pred_check_branch
      %75 = sbr.rel (0) target = $region29
    $region28: #{matmul_free_gru.1} parent=1 // pred_region
      %77 = vsyncadd [#allocation8], 0
      %s78 = sshll.u32 %s6, 4
      %s79 = int_to_ptr.hbm [resolvable:$true] %s78
      %s80 = sshll.u32 [#allocation9], 4
      %s81 = int_to_ptr.vmem [resolvable:$true] %s80
      %86 = dma.hbm_to_vmem [thread:$0]  %s79, 1024, %s81, [#allocation8], 64, 64, 4
    $region29: #{matmul_free_gru.1} parent=1 // pred_fallthru
      _
    // Predicated region
    $region30: #{matmul_free_gru.1} parent=1 // pred_check
      _
    $region31: #{matmul_free_gru.1} parent=1 // pred_check_branch
      %88 = sbr.rel (0) target = $region33
    $region32: #{matmul_free_gru.1} parent=1 // pred_region
      %90 = vsyncadd [#allocation11], 0
      %s91 = sshll.u32 %s7, 4
      %s92 = int_to_ptr.hbm [resolvable:$true] %s91
      %s93 = sshll.u32 [#allocation10], 4
      %s94 = int_to_ptr.vmem [resolvable:$true] %s93
      %99 = dma.hbm_to_vmem [thread:$0]  %s92, 1024, %s94, [#allocation11], 64, 64, 4
    $region33: #{matmul_free_gru.1} parent=1 // pred_fallthru
      _
    // Predicated region
    $region34: #{matmul_free_gru.1} parent=1 // pred_check
      _
    $region35: #{matmul_free_gru.1} parent=1 // pred_check_branch
      %101 = sbr.rel (0) target = $region37
    $region36: #{matmul_free_gru.1} parent=1 // pred_region
      %103 = vsyncadd [#allocation11], 0
      %s104 = sshll.u32 %s8, 4
      %s105 = int_to_ptr.hbm [resolvable:$true] %s104
      %s106 = sshll.u32 [#allocation12], 4
      %s107 = int_to_ptr.vmem [resolvable:$true] %s106
      %112 = dma.hbm_to_vmem [thread:$0]  %s105, 1024, %s107, [#allocation11], 64, 64, 4
    $region37: #{matmul_free_gru.1} parent=1 // pred_fallthru
      _
    // Predicated region
    $region38: #{matmul_free_gru.1} parent=1 // pred_check
      _
    $region39: #{matmul_free_gru.1} parent=1 // pred_check_branch
      %114 = sbr.rel (0) target = $region41
    $region40: #{matmul_free_gru.1} parent=1 // pred_region
      %116 = vsyncadd [#allocation14], 0
      %s117 = sshll.u32 %s9, 4
      %s118 = int_to_ptr.hbm [resolvable:$true] %s117
      %s119 = sshll.u32 [#allocation13], 4
      %s120 = int_to_ptr.vmem [resolvable:$true] %s119
      %125 = dma.hbm_to_vmem [thread:$0]  %s118, 1024, %s120, [#allocation14], 64, 64, 4
    $region41: #{matmul_free_gru.1} parent=1 // pred_fallthru
      _
    // Predicated region
    $region42: #{matmul_free_gru.1} parent=1 // pred_check
      _
    $region43: #{matmul_free_gru.1} parent=1 // pred_check_branch
      %127 = sbr.rel (0) target = $region45
    $region44: #{matmul_free_gru.1} parent=1 // pred_region
      %129 = dma.done [#allocation3], 128
    $region45: #{matmul_free_gru.1} parent=1 // pred_fallthru
      _
    // Predicated region
    $region46: #{matmul_free_gru.1} parent=1 // pred_check
      _
    $region47: #{matmul_free_gru.1} parent=1 // pred_check_branch
      %131 = sbr.rel (0) target = $region49
    $region48: #{matmul_free_gru.1} parent=1 // pred_region
      %133 = dma.done [#allocation5], 256
    $region49: #{matmul_free_gru.1} parent=1 // pred_fallthru
      _
    // Predicated region
    $region50: #{matmul_free_gru.1} parent=1 // pred_check
      _
    $region51: #{matmul_free_gru.1} parent=1 // pred_check_branch
      %135 = sbr.rel (0) target = $region53
    $region52: #{matmul_free_gru.1} parent=1 // pred_region
      %137 = dma.done [#allocation5], 1024
    $region53: #{matmul_free_gru.1} parent=1 // pred_fallthru
      _
    // Predicated region
    $region54: #{matmul_free_gru.1} parent=1 // pred_check
      _
    $region55: #{matmul_free_gru.1} parent=1 // pred_check_branch
      %139 = sbr.rel (0) target = $region57
    $region56: #{matmul_free_gru.1} parent=1 // pred_region
      %141 = dma.done [#allocation8], 1024
    $region57: #{matmul_free_gru.1} parent=1 // pred_fallthru
      _
    // Predicated region
    $region58: #{matmul_free_gru.1} parent=1 // pred_check
      _
    $region59: #{matmul_free_gru.1} parent=1 // pred_check_branch
      %143 = sbr.rel (0) target = $region61
    $region60: #{matmul_free_gru.1} parent=1 // pred_region
      %145 = dma.done [#allocation8], 1024
    $region61: #{matmul_free_gru.1} parent=1 // pred_fallthru
      _
    // Predicated region
    $region62: #{matmul_free_gru.1} parent=1 // pred_check
      _
    $region63: #{matmul_free_gru.1} parent=1 // pred_check_branch
      %147 = sbr.rel (0) target = $region65
    $region64: #{matmul_free_gru.1} parent=1 // pred_region
      %149 = dma.done [#allocation11], 1024
    $region65: #{matmul_free_gru.1} parent=1 // pred_fallthru
      _
    // Predicated region
    $region66: #{matmul_free_gru.1} parent=1 // pred_check
      _
    $region67: #{matmul_free_gru.1} parent=1 // pred_check_branch
      %151 = sbr.rel (0) target = $region69
    $region68: #{matmul_free_gru.1} parent=1 // pred_region
      %153 = dma.done [#allocation11], 1024
    $region69: #{matmul_free_gru.1} parent=1 // pred_fallthru
      _
    // Predicated region
    $region70: #{matmul_free_gru.1} parent=1 // pred_check
      _
    $region71: #{matmul_free_gru.1} parent=1 // pred_check_branch
      %155 = sbr.rel (0) target = $region73
    $region72: #{matmul_free_gru.1} parent=1 // pred_region
      %157 = dma.done [#allocation14], 1024
    $region73: #{matmul_free_gru.1} parent=1 // pred_fallthru
      _
    %v158 = vld [vmem:[%s0] sm:$0xff]
    %v159 = vld [vmem:[%s1] sm:$0xff]
    %v160 = vld [vmem:[#allocation2] sm:$0xff]
    %v161 = vld [vmem:[#allocation4] sm:$0xff]
    %v162 = vld [vmem:[#allocation4 + $0x8] sm:$0xff]
    %v163 = vperm.slane %v160, 0
    %v164 = vmul.f32 %v158, %v163
    %v165 = vperm.slane %v160, 1
    %v166 = vadd.f32 %v164, %v165
    %v167 = vpack.c.bf16 %v166, %v166
    %v168 = vperm.slane %v160, 2
    %v169 = vmul.f32 %v158, %v168
    %v170 = vperm.slane %v160, 3
    %v171 = vadd.f32 %v169, %v170
    %v172 = vpack.c.bf16 %v171, %v171
    %v173 = vperm.slane %v160, 4
    %v174 = vmul.f32 %v158, %v173
    %v175 = vperm.slane %v160, 5
    %v176 = vadd.f32 %v174, %v175
    %v177 = vpack.c.bf16 %v176, %v176
    %v178 = vperm.slane %v161, 0
    %v179 = vmul.f32 %v159, %v178
    %v180 = vperm.slane %v161, 1
    %v181 = vadd.f32 %v179, %v180
    %v182 = vpack.c.bf16 %v181, %v181
    %v183 = vperm.slane %v161, 2
    %v184 = vmul.f32 %v159, %v183
    %v185 = vperm.slane %v161, 3
    %v186 = vadd.f32 %v184, %v185
    %v187 = vpack.c.bf16 %v186, %v186
    %v188 = vld [vmem:[#allocation12] sm:$0xf]
    %v189 = vld [vmem:[#allocation12 + $0x4] sm:$0xf]
    %v190 = vld [vmem:[#allocation12 + $0x8] sm:$0xf]
    %v191 = vld [vmem:[#allocation12 + $0xc] sm:$0xf]
    %v192 = vld [vmem:[#allocation12 + $0x10] sm:$0xf]
    %v193 = vld [vmem:[#allocation12 + $0x14] sm:$0xf]
    %v194 = vld [vmem:[#allocation12 + $0x18] sm:$0xf]
    %v195 = vld [vmem:[#allocation12 + $0x1c] sm:$0xf]
    %v196 = vld [vmem:[#allocation12 + $0x20] sm:$0xf]
    %v197 = vld [vmem:[#allocation12 + $0x24] sm:$0xf]
    %v198 = vld [vmem:[#allocation12 + $0x28] sm:$0xf]
    %v199 = vld [vmem:[#allocation12 + $0x2c] sm:$0xf]
    %v200 = vld [vmem:[#allocation12 + $0x30] sm:$0xf]
    %v201 = vld [vmem:[#allocation12 + $0x34] sm:$0xf]
    %v202 = vld [vmem:[#allocation12 + $0x38] sm:$0xf]
    %v203 = vld [vmem:[#allocation12 + $0x3c] sm:$0xf]
    %v204 = vld [vmem:[#allocation6] sm:$0xf]
    %v205 = vld [vmem:[#allocation6 + $0x4] sm:$0xf]
    %v206 = vld [vmem:[#allocation6 + $0x8] sm:$0xf]
    %v207 = vld [vmem:[#allocation6 + $0xc] sm:$0xf]
    %v208 = vld [vmem:[#allocation6 + $0x10] sm:$0xf]
    %v209 = vld [vmem:[#allocation6 + $0x14] sm:$0xf]
    %v210 = vld [vmem:[#allocation6 + $0x18] sm:$0xf]
    %v211 = vld [vmem:[#allocation6 + $0x1c] sm:$0xf]
    %v212 = vld [vmem:[#allocation6 + $0x20] sm:$0xf]
    %v213 = vld [vmem:[#allocation6 + $0x24] sm:$0xf]
    %v214 = vld [vmem:[#allocation6 + $0x28] sm:$0xf]
    %v215 = vld [vmem:[#allocation6 + $0x2c] sm:$0xf]
    %v216 = vld [vmem:[#allocation6 + $0x30] sm:$0xf]
    %v217 = vld [vmem:[#allocation6 + $0x34] sm:$0xf]
    %v218 = vld [vmem:[#allocation6 + $0x38] sm:$0xf]
    %v219 = vld [vmem:[#allocation6 + $0x3c] sm:$0xf]
    %v220 = vld [vmem:[#allocation7] sm:$0xf]
    %v221 = vld [vmem:[#allocation7 + $0x4] sm:$0xf]
    %v222 = vld [vmem:[#allocation7 + $0x8] sm:$0xf]
    %v223 = vld [vmem:[#allocation7 + $0xc] sm:$0xf]
    %v224 = vld [vmem:[#allocation7 + $0x10] sm:$0xf]
    %v225 = vld [vmem:[#allocation7 + $0x14] sm:$0xf]
    %v226 = vld [vmem:[#allocation7 + $0x18] sm:$0xf]
    %v227 = vld [vmem:[#allocation7 + $0x1c] sm:$0xf]
    %v228 = vld [vmem:[#allocation7 + $0x20] sm:$0xf]
    %v229 = vld [vmem:[#allocation7 + $0x24] sm:$0xf]
    %v230 = vld [vmem:[#allocation7 + $0x28] sm:$0xf]
    %v231 = vld [vmem:[#allocation7 + $0x2c] sm:$0xf]
    %v232 = vld [vmem:[#allocation7 + $0x30] sm:$0xf]
    %v233 = vld [vmem:[#allocation7 + $0x34] sm:$0xf]
    %v234 = vld [vmem:[#allocation7 + $0x38] sm:$0xf]
    %v235 = vld [vmem:[#allocation7 + $0x3c] sm:$0xf]
    %v252 = vunpack.c.l.b16 %v220
    %v253 = vunpack.c.l.b16 %v221
    %v254 = vunpack.c.l.b16 %v222
    %v255 = vunpack.c.l.b16 %v223
    %v256 = vunpack.c.l.b16 %v224
    %v257 = vunpack.c.l.b16 %v225
    %v258 = vunpack.c.l.b16 %v226
    %v259 = vunpack.c.l.b16 %v227
    %v260 = vunpack.c.l.b16 %v228
    %v261 = vunpack.c.l.b16 %v229
    %v262 = vunpack.c.l.b16 %v230
    %v263 = vunpack.c.l.b16 %v231
    %v264 = vunpack.c.l.b16 %v232
    %v265 = vunpack.c.l.b16 %v233
    %v266 = vunpack.c.l.b16 %v234
    %v267 = vunpack.c.l.b16 %v235
    %v268 = vpack.c.b16 %v253, %v252
    %v269 = vpack.c.b16 %v255, %v254
    %v270 = vpack.c.b16 %v257, %v256
    %v271 = vpack.c.b16 %v259, %v258
    %v272 = vpack.c.b16 %v261, %v260
    %v273 = vpack.c.b16 %v263, %v262
    %v274 = vpack.c.b16 %v265, %v264
    %v275 = vpack.c.b16 %v267, %v266
    %284 = vmatpush.bf16.msra.mxu0 %v275
    %285 = vmatpush.bf16.msra.mxu0 %v274
    %286 = vmatpush.bf16.msra.mxu0 %v273
    %287 = vmatpush.bf16.msra.mxu0 %v272
    %288 = vmatpush.bf16.msra.mxu0 %v271
    %289 = vmatpush.bf16.msra.mxu0 %v270
    %290 = vmatpush.bf16.msra.mxu0 %v269
    %291 = vmatpush.bf16.msra.mxu0 %v268
    %292 = vmatmul.bf16.gmra.mxu0 %v182
    %v293 = vpop.f32.mrf.mxu0
    %v294 = vadd.f32 0.0, %v293
    %v295 = vpop.f32.mrf.mxu0
    %296 = vdwg.mxu0
    %v313 = vunpack.c.l.b16 %v204
    %v314 = vunpack.c.l.b16 %v205
    %v315 = vunpack.c.l.b16 %v206
    %v316 = vunpack.c.l.b16 %v207
    %v317 = vunpack.c.l.b16 %v208
    %v318 = vunpack.c.l.b16 %v209
    %v319 = vunpack.c.l.b16 %v210
    %v320 = vunpack.c.l.b16 %v211
    %v321 = vunpack.c.l.b16 %v212
    %v322 = vunpack.c.l.b16 %v213
    %v323 = vunpack.c.l.b16 %v214
    %v324 = vunpack.c.l.b16 %v215
    %v325 = vunpack.c.l.b16 %v216
    %v326 = vunpack.c.l.b16 %v217
    %v327 = vunpack.c.l.b16 %v218
    %v328 = vunpack.c.l.b16 %v219
    %v329 = vpack.c.b16 %v314, %v313
    %v330 = vpack.c.b16 %v316, %v315
    %v331 = vpack.c.b16 %v318, %v317
    %v332 = vpack.c.b16 %v320, %v319
    %v333 = vpack.c.b16 %v322, %v321
    %v334 = vpack.c.b16 %v324, %v323
    %v335 = vpack.c.b16 %v326, %v325
    %v336 = vpack.c.b16 %v328, %v327
    %345 = vmatpush.bf16.msra.mxu0 %v336
    %346 = vmatpush.bf16.msra.mxu0 %v335
    %347 = vmatpush.bf16.msra.mxu0 %v334
    %348 = vmatpush.bf16.msra.mxu0 %v333
    %349 = vmatpush.bf16.msra.mxu0 %v332
    %350 = vmatpush.bf16.msra.mxu0 %v331
    %351 = vmatpush.bf16.msra.mxu0 %v330
    %352 = vmatpush.bf16.msra.mxu0 %v329
    %353 = vmatmul.bf16.gmra.mxu0 %v167
    %v354 = vpop.f32.mrf.mxu0
    %v355 = vadd.f32 %v294, %v354
    %v356 = vpop.f32.mrf.mxu0
    %357 = vdwg.mxu0
    %v358 = vperm.slane %v161, 6
    %v359 = vadd.f32 %v355, %v358
    %v360 = vxor.u32 %v359, 2147483648
    %v361 = vmul.f32 %v360, 1.442695
    %v362 = vpow.pop %v361
    %v363 = vadd.f32 %v362, 1.0
    %v364 = vrcp.pop %v363
    %v365 = vmul.f32 %v363, %v364
    %v366 = vsub.f32 1.0, %v365
    %v367 = vmul.f32 %v364, %v366
    %v368 = vadd.f32 %v364, %v367
    %vm369 = vweird.f32 %v363
    %vm370 = vweird.f32 %v364
    %vm371 = vmor %vm369, %vm370
    %v372 = vsel %vm371, %v364, %v368
    %v373 = vand.u32 2147483647, %v363
    %vm374 = vcmp.eq.f32.partialorder %v373, 8.507059e+37
    %v375 = vand.u32 %v363, 2147483648
    %v376 = vor.u32 1.1754944e-38, %v375
    %v377 = vsel %vm374, %v376, %v372
    %v378 = vmul.f32 1.0, %v377
    %v379 = vld [vmem:[#allocation9] sm:$0xf]
    %v380 = vld [vmem:[#allocation9 + $0x4] sm:$0xf]
    %v381 = vld [vmem:[#allocation9 + $0x8] sm:$0xf]
    %v382 = vld [vmem:[#allocation9 + $0xc] sm:$0xf]
    %v383 = vld [vmem:[#allocation9 + $0x10] sm:$0xf]
    %v384 = vld [vmem:[#allocation9 + $0x14] sm:$0xf]
    %v385 = vld [vmem:[#allocation9 + $0x18] sm:$0xf]
    %v386 = vld [vmem:[#allocation9 + $0x1c] sm:$0xf]
    %v387 = vld [vmem:[#allocation9 + $0x20] sm:$0xf]
    %v388 = vld [vmem:[#allocation9 + $0x24] sm:$0xf]
    %v389 = vld [vmem:[#allocation9 + $0x28] sm:$0xf]
    %v390 = vld [vmem:[#allocation9 + $0x2c] sm:$0xf]
    %v391 = vld [vmem:[#allocation9 + $0x30] sm:$0xf]
    %v392 = vld [vmem:[#allocation9 + $0x34] sm:$0xf]
    %v393 = vld [vmem:[#allocation9 + $0x38] sm:$0xf]
    %v394 = vld [vmem:[#allocation9 + $0x3c] sm:$0xf]
    %v395 = vld [vmem:[#allocation10] sm:$0xf]
    %v396 = vld [vmem:[#allocation10 + $0x4] sm:$0xf]
    %v397 = vld [vmem:[#allocation10 + $0x8] sm:$0xf]
    %v398 = vld [vmem:[#allocation10 + $0xc] sm:$0xf]
    %v399 = vld [vmem:[#allocation10 + $0x10] sm:$0xf]
    %v400 = vld [vmem:[#allocation10 + $0x14] sm:$0xf]
    %v401 = vld [vmem:[#allocation10 + $0x18] sm:$0xf]
    %v402 = vld [vmem:[#allocation10 + $0x1c] sm:$0xf]
    %v403 = vld [vmem:[#allocation10 + $0x20] sm:$0xf]
    %v404 = vld [vmem:[#allocation10 + $0x24] sm:$0xf]
    %v405 = vld [vmem:[#allocation10 + $0x28] sm:$0xf]
    %v406 = vld [vmem:[#allocation10 + $0x2c] sm:$0xf]
    %v407 = vld [vmem:[#allocation10 + $0x30] sm:$0xf]
    %v408 = vld [vmem:[#allocation10 + $0x34] sm:$0xf]
    %v409 = vld [vmem:[#allocation10 + $0x38] sm:$0xf]
    %v410 = vld [vmem:[#allocation10 + $0x3c] sm:$0xf]
    %v427 = vunpack.c.l.b16 %v395
    %v428 = vunpack.c.l.b16 %v396
    %v429 = vunpack.c.l.b16 %v397
    %v430 = vunpack.c.l.b16 %v398
    %v431 = vunpack.c.l.b16 %v399
    %v432 = vunpack.c.l.b16 %v400
    %v433 = vunpack.c.l.b16 %v401
    %v434 = vunpack.c.l.b16 %v402
    %v435 = vunpack.c.l.b16 %v403
    %v436 = vunpack.c.l.b16 %v404
    %v437 = vunpack.c.l.b16 %v405
    %v438 = vunpack.c.l.b16 %v406
    %v439 = vunpack.c.l.b16 %v407
    %v440 = vunpack.c.l.b16 %v408
    %v441 = vunpack.c.l.b16 %v409
    %v442 = vunpack.c.l.b16 %v410
    %v443 = vpack.c.b16 %v428, %v427
    %v444 = vpack.c.b16 %v430, %v429
    %v445 = vpack.c.b16 %v432, %v431
    %v446 = vpack.c.b16 %v434, %v433
    %v447 = vpack.c.b16 %v436, %v435
    %v448 = vpack.c.b16 %v438, %v437
    %v449 = vpack.c.b16 %v440, %v439
    %v450 = vpack.c.b16 %v442, %v441
    %459 = vmatpush.bf16.msra.mxu0 %v450
    %460 = vmatpush.bf16.msra.mxu0 %v449
    %461 = vmatpush.bf16.msra.mxu0 %v448
    %462 = vmatpush.bf16.msra.mxu0 %v447
    %463 = vmatpush.bf16.msra.mxu0 %v446
    %464 = vmatpush.bf16.msra.mxu0 %v445
    %465 = vmatpush.bf16.msra.mxu0 %v444
    %466 = vmatpush.bf16.msra.mxu0 %v443
    %467 = vmatmul.bf16.gmra.mxu0 %v187
    %v468 = vpop.f32.mrf.mxu0
    %v469 = vadd.f32 0.0, %v468
    %v470 = vpop.f32.mrf.mxu0
    %471 = vdwg.mxu0
    %v488 = vunpack.c.l.b16 %v379
    %v489 = vunpack.c.l.b16 %v380
    %v490 = vunpack.c.l.b16 %v381
    %v491 = vunpack.c.l.b16 %v382
    %v492 = vunpack.c.l.b16 %v383
    %v493 = vunpack.c.l.b16 %v384
    %v494 = vunpack.c.l.b16 %v385
    %v495 = vunpack.c.l.b16 %v386
    %v496 = vunpack.c.l.b16 %v387
    %v497 = vunpack.c.l.b16 %v388
    %v498 = vunpack.c.l.b16 %v389
    %v499 = vunpack.c.l.b16 %v390
    %v500 = vunpack.c.l.b16 %v391
    %v501 = vunpack.c.l.b16 %v392
    %v502 = vunpack.c.l.b16 %v393
    %v503 = vunpack.c.l.b16 %v394
    %v504 = vpack.c.b16 %v489, %v488
    %v505 = vpack.c.b16 %v491, %v490
    %v506 = vpack.c.b16 %v493, %v492
    %v507 = vpack.c.b16 %v495, %v494
    %v508 = vpack.c.b16 %v497, %v496
    %v509 = vpack.c.b16 %v499, %v498
    %v510 = vpack.c.b16 %v501, %v500
    %v511 = vpack.c.b16 %v503, %v502
    %520 = vmatpush.bf16.msra.mxu0 %v511
    %521 = vmatpush.bf16.msra.mxu0 %v510
    %522 = vmatpush.bf16.msra.mxu0 %v509
    %523 = vmatpush.bf16.msra.mxu0 %v508
    %524 = vmatpush.bf16.msra.mxu0 %v507
    %525 = vmatpush.bf16.msra.mxu0 %v506
    %526 = vmatpush.bf16.msra.mxu0 %v505
    %527 = vmatpush.bf16.msra.mxu0 %v504
    %528 = vmatmul.bf16.gmra.mxu0 %v172
    %v529 = vpop.f32.mrf.mxu0
    %v530 = vadd.f32 %v469, %v529
    %v531 = vpop.f32.mrf.mxu0
    %532 = vdwg.mxu0
    %v533 = vperm.slane %v161, 7
    %v534 = vadd.f32 %v530, %v533
    %v535 = vxor.u32 %v534, 2147483648
    %v536 = vmul.f32 %v535, 1.442695
    %v537 = vpow.pop %v536
    %v538 = vadd.f32 %v537, 1.0
    %v539 = vrcp.pop %v538
    %v540 = vmul.f32 %v538, %v539
    %v541 = vsub.f32 1.0, %v540
    %v542 = vmul.f32 %v539, %v541
    %v543 = vadd.f32 %v539, %v542
    %vm544 = vweird.f32 %v538
    %vm545 = vweird.f32 %v539
    %vm546 = vmor %vm544, %vm545
    %v547 = vsel %vm546, %v539, %v543
    %v548 = vand.u32 2147483647, %v538
    %vm549 = vcmp.eq.f32.partialorder %v548, 8.507059e+37
    %v550 = vand.u32 %v538, 2147483648
    %v551 = vor.u32 1.1754944e-38, %v550
    %v552 = vsel %vm549, %v551, %v547
    %v553 = vmul.f32 1.0, %v552
    %v554 = vmul.f32 %v553, %v159
    %v555 = vperm.slane %v161, 4
    %v556 = vmul.f32 %v554, %v555
    %v557 = vperm.slane %v161, 5
    %v558 = vadd.f32 %v556, %v557
    %v559 = vpack.c.bf16 %v558, %v558
    %v560 = vld [vmem:[#allocation13] sm:$0xf]
    %v561 = vld [vmem:[#allocation13 + $0x4] sm:$0xf]
    %v562 = vld [vmem:[#allocation13 + $0x8] sm:$0xf]
    %v563 = vld [vmem:[#allocation13 + $0xc] sm:$0xf]
    %v564 = vld [vmem:[#allocation13 + $0x10] sm:$0xf]
    %v565 = vld [vmem:[#allocation13 + $0x14] sm:$0xf]
    %v566 = vld [vmem:[#allocation13 + $0x18] sm:$0xf]
    %v567 = vld [vmem:[#allocation13 + $0x1c] sm:$0xf]
    %v568 = vld [vmem:[#allocation13 + $0x20] sm:$0xf]
    %v569 = vld [vmem:[#allocation13 + $0x24] sm:$0xf]
    %v570 = vld [vmem:[#allocation13 + $0x28] sm:$0xf]
    %v571 = vld [vmem:[#allocation13 + $0x2c] sm:$0xf]
    %v572 = vld [vmem:[#allocation13 + $0x30] sm:$0xf]
    %v573 = vld [vmem:[#allocation13 + $0x34] sm:$0xf]
    %v574 = vld [vmem:[#allocation13 + $0x38] sm:$0xf]
    %v575 = vld [vmem:[#allocation13 + $0x3c] sm:$0xf]
    %v592 = vunpack.c.l.b16 %v560
    %v593 = vunpack.c.l.b16 %v561
    %v594 = vunpack.c.l.b16 %v562
    %v595 = vunpack.c.l.b16 %v563
    %v596 = vunpack.c.l.b16 %v564
    %v597 = vunpack.c.l.b16 %v565
    %v598 = vunpack.c.l.b16 %v566
    %v599 = vunpack.c.l.b16 %v567
    %v600 = vunpack.c.l.b16 %v568
    %v601 = vunpack.c.l.b16 %v569
    %v602 = vunpack.c.l.b16 %v570
    %v603 = vunpack.c.l.b16 %v571
    %v604 = vunpack.c.l.b16 %v572
    %v605 = vunpack.c.l.b16 %v573
    %v606 = vunpack.c.l.b16 %v574
    %v607 = vunpack.c.l.b16 %v575
    %v608 = vpack.c.b16 %v593, %v592
    %v609 = vpack.c.b16 %v595, %v594
    %v610 = vpack.c.b16 %v597, %v596
    %v611 = vpack.c.b16 %v599, %v598
    %v612 = vpack.c.b16 %v601, %v600
    %v613 = vpack.c.b16 %v603, %v602
    %v614 = vpack.c.b16 %v605, %v604
    %v615 = vpack.c.b16 %v607, %v606
    %624 = vmatpush.bf16.msra.mxu0 %v615
    %625 = vmatpush.bf16.msra.mxu0 %v614
    %626 = vmatpush.bf16.msra.mxu0 %v613
    %627 = vmatpush.bf16.msra.mxu0 %v612
    %628 = vmatpush.bf16.msra.mxu0 %v611
    %629 = vmatpush.bf16.msra.mxu0 %v610
    %630 = vmatpush.bf16.msra.mxu0 %v609
    %631 = vmatpush.bf16.msra.mxu0 %v608
    %632 = vmatmul.bf16.gmra.mxu0 %v559
    %v633 = vpop.f32.mrf.mxu0
    %v634 = vadd.f32 0.0, %v633
    %v635 = vpop.f32.mrf.mxu0
    %636 = vdwg.mxu0
    %v653 = vunpack.c.l.b16 %v188
    %v654 = vunpack.c.l.b16 %v189
    %v655 = vunpack.c.l.b16 %v190
    %v656 = vunpack.c.l.b16 %v191
    %v657 = vunpack.c.l.b16 %v192
    %v658 = vunpack.c.l.b16 %v193
    %v659 = vunpack.c.l.b16 %v194
    %v660 = vunpack.c.l.b16 %v195
    %v661 = vunpack.c.l.b16 %v196
    %v662 = vunpack.c.l.b16 %v197
    %v663 = vunpack.c.l.b16 %v198
    %v664 = vunpack.c.l.b16 %v199
    %v665 = vunpack.c.l.b16 %v200
    %v666 = vunpack.c.l.b16 %v201
    %v667 = vunpack.c.l.b16 %v202
    %v668 = vunpack.c.l.b16 %v203
    %v669 = vpack.c.b16 %v654, %v653
    %v670 = vpack.c.b16 %v656, %v655
    %v671 = vpack.c.b16 %v658, %v657
    %v672 = vpack.c.b16 %v660, %v659
    %v673 = vpack.c.b16 %v662, %v661
    %v674 = vpack.c.b16 %v664, %v663
    %v675 = vpack.c.b16 %v666, %v665
    %v676 = vpack.c.b16 %v668, %v667
    %685 = vmatpush.bf16.msra.mxu0 %v676
    %686 = vmatpush.bf16.msra.mxu0 %v675
    %687 = vmatpush.bf16.msra.mxu0 %v674
    %688 = vmatpush.bf16.msra.mxu0 %v673
    %689 = vmatpush.bf16.msra.mxu0 %v672
    %690 = vmatpush.bf16.msra.mxu0 %v671
    %691 = vmatpush.bf16.msra.mxu0 %v670
    %692 = vmatpush.bf16.msra.mxu0 %v669
    %693 = vmatmul.bf16.gmra.mxu0 %v177
    %v694 = vpop.f32.mrf.mxu0
    %v695 = vadd.f32 %v634, %v694
    %v696 = vpop.f32.mrf.mxu0
    %697 = vdwg.mxu0
    %v698 = vperm.slane %v162, 0
    %v699 = vadd.f32 %v695, %v698
    %v700 = vtanh.pop %v699
    %v701 = vsub.f32 1.0, %v378
    %v702 = vmul.f32 %v701, %v159
    %v703 = vmul.f32 %v378, %v700
    %v704 = vadd.f32 %v702, %v703
    %705 = vadd.xlane.f32.xlu0 %v704
    %v706 = vpop.xlane.xlu0 %705
    %v707 = vrcp.pop 128.0
    %v708 = vmul.f32 128.0, %v707
    %v709 = vsub.f32 1.0, %v708
    %v710 = vmul.f32 %v707, %v709
    %v711 = vadd.f32 %v707, %v710
    %vm712 = vweird.f32 %v707
    %v713 = vsel %vm712, %v707, %v711
    %v714 = vmul.f32 %v706, %v713
    %v715 = vsub.f32 %v704, %v714
    %v716 = vmul.f32 %v715, %v715
    %717 = vadd.xlane.f32.xlu0 %v716
    %v718 = vpop.xlane.xlu0 %717
    %v719 = vmul.f32 %v718, %v713
    %v720 = vadd.f32 %v719, 1e-05
    %v721 = vrsqrt.pop %v720
    %v722 = vmul.f32 %v721, %v720
    %v723 = vmul.f32 %v722, %v721
    %v724 = vmul.f32 0.5, %v723
    %v725 = vsub.f32 1.5, %v724
    %v726 = vmul.f32 %v721, %v725
    %vm727 = vweird.f32 %v720
    %vm728 = vweird.f32 %v721
    %vm729 = vmor %vm727, %vm728
    %v730 = vsel %vm729, %v721, %v726
    %v731 = vmul.f32 %v715, %v730
    %v732 = vperm.slane %v162, 1
    %v733 = vmul.f32 %v731, %v732
    %v734 = vperm.slane %v162, 2
    %v735 = vadd.f32 %v733, %v734
    %736 = vst [vmem:[%s10] sm:$0xff] %v735
    // Predicated region
    $region74: #{matmul_free_gru.1} parent=1 // pred_check
      _
    $region75: #{matmul_free_gru.1} parent=1 // pred_check_branch
      %738 = sbr.rel (0) target = $region77
    $region76: #{matmul_free_gru.1} parent=1 // pred_region
      _
    $region77: #{matmul_free_gru.1} parent=1 // pred_fallthru
      _
    // Predicated region
    $region78: #{matmul_free_gru.1} parent=1 // pred_check
      _
    $region79: #{matmul_free_gru.1} parent=1 // pred_check_branch
      %740 = sbr.rel (0) target = $region81
    $region80: #{matmul_free_gru.1} parent=1 // pred_region
      _
    $region81: #{matmul_free_gru.1} parent=1 // pred_fallthru
      _
    %741 = vsyncpa [#allocation3], 1
    %742 = vsyncpa [#allocation5], 1
    %743 = vsyncpa [#allocation8], 1
    %744 = vsyncpa [#allocation11], 1
    %745 = vsyncpa [#allocation14], 1

</llo_original>
